<compile_context>
chip_gen: v6e
topology: v6e:2x2x1
jax: 0.10.0
libtpu: 0.0.40
codegen_flags: <defaults>
</compile_context>

<pallas_src>
import jax
import jax.numpy as jnp
from jax import lax
from jax.experimental import pallas as pl
from jax.experimental.pallas import tpu as pltpu

# Large finite mask value: keeps exp(s - m) well defined for rows that are fully
# masked inside a partially-visible KV block (underflows to exactly 0 in f32,
# matching the -inf masking of the PyTorch reference).
_MASK_VALUE = -0.7 * float(jnp.finfo(jnp.float32).max)


def _vmem_capacity_bytes() -> int:
    try:
        return int(pltpu.get_tpu_info().vmem_capacity_bytes)
    except Exception:
        return 64 * 1024 * 1024  # conservative default: v7x per-TensorCore VMEM


def _vmem_limit_bytes(needed: int, capacity: int) -> int:
    # 2x margin over the static estimate, never below the 32 MiB scoped default,
    # never above 3/4 of physical VMEM (headroom for compiler-internal scratch).
    return int(min(max(2 * needed, 32 * 1024 * 1024), (capacity * 3) // 4))


def _choose_seq_tile(T: int, n_head: int, head_dim: int, itemsize: int,
                     vmem_cap: int) -> int:
    """Largest sequence tile that divides T, is a multiple of 16 (bf16 packs two
    rows per sublane) and keeps the per-step f32 score/prob intermediates plus
    double-buffered blocks comfortably inside the VMEM budget."""
    if T <= 256:
        return T
    budget = vmem_cap // 3
    for t in (512, 256, 128, 64, 32, 16):          # bigger tiles allowed on v5e/v6e
        if T % t:
            continue
        live = (2 * n_head * t * t * 4             # f32 scores + probs
                + n_head * t * head_dim * 4        # f32 accumulator scratch
                + 8 * n_head * t * head_dim * itemsize)  # q/k/v/out blocks (2x buffered)
        if live <= budget:
            return t
    return 8 if T % 8 == 0 else T                  # see TODO(synk) above


# --------------------------------------------------------------------------- #
# Pass 1: fused Q/K/V projections (head-major output layout)
# --------------------------------------------------------------------------- #
def _qkv_proj_kernel(x_ref, wqt_ref, wkt_ref, wvt_ref, q_ref, k_ref, v_ref):
    # x_ref   : (1, tt, C)      sequence tile
    # w*t_ref : (C, C)          pre-transposed weights, VMEM-resident (constant index_map)
    # q/k/v   : (1, H, tt, hd)  head-major outputs
    n_head = q_ref.shape[1]
    hd = q_ref.shape[3]
    out_dt = q_ref.dtype

    x_t = x_ref[0]                                                   # (tt, C)
    q_full = jnp.dot(x_t, wqt_ref[...],
                     preferred_element_type=jnp.float32).astype(out_dt)
    k_full = jnp.dot(x_t, wkt_ref[...],
                     preferred_element_type=jnp.float32).astype(out_dt)
    v_full = jnp.dot(x_t, wvt_ref[...],
                     preferred_element_type=jnp.float32).astype(out_dt)
    for h in range(n_head):                                          # static, store-only loop
        sl = slice(h * hd, (h + 1) * hd)
        q_ref[0, h] = q_full[:, sl]
        k_ref[0, h] = k_full[:, sl]
        v_ref[0, h] = v_full[:, sl]


# --------------------------------------------------------------------------- #
# Pass 2: flash attention (online softmax, causal block skipping) + fused fc_out
# --------------------------------------------------------------------------- #
def _flash_attn_kernel(q_ref, k_ref, v_ref, wot_ref, bo_ref, o_ref,
                       m_ref, l_ref, acc_ref):
    # q_ref   : (1, H, tq, hd)      k_ref/v_ref : (1, H, tk, hd)
    # wot_ref : (H, hd, C)  resident    bo_ref : (1, C) f32
    # o_ref   : (1, tq, C)  lane-dense output block (constant across the KV axis)
    # scratch : m/l (H, tq, 1) f32, acc (H, tq, hd) f32
    qi = pl.program_id(1)
    ki = pl.program_id(2)

    n_head = q_ref.shape[1]
    tq = q_ref.shape[2]
    hd = q_ref.shape[3]
    tk = k_ref.shape[2]
    kv_per_q = tq // tk
    last_ki = (qi + 1) * kv_per_q - 1            # last KV block that touches this q tile

    @pl.when(ki == 0)
    def _init():
        m_ref[...] = jnp.full(m_ref.shape, -jnp.inf, m_ref.dtype)
        l_ref[...] = jnp.zeros(l_ref.shape, l_ref.dtype)
        acc_ref[...] = jnp.zeros(acc_ref.shape, acc_ref.dtype)

    @pl.when(ki <= last_ki)                       # causal block skipping
    def _compute():
        q = q_ref[0]                                                  # (H, tq, hd)
        k = k_ref[0]                                                  # (H, tk, hd)
        v = v_ref[0]                                                  # (H, tk, hd)
        # batched over heads: no per-head Python loop, no q/k transpose
        s = jnp.einsum("hqd,hkd->hqk", q, k,
                       preferred_element_type=jnp.float32)            # (H, tq, tk) f32

        row = lax.broadcasted_iota(jnp.int32, (tq, tk), 0) + qi * tq
        col = lax.broadcasted_iota(jnp.int32, (tq, tk), 1) + ki * tk
        s = jnp.where((col <= row)[None, :, :], s, _MASK_VALUE)

        m_prev = m_ref[...]                                           # (H, tq, 1)
        m_new = jnp.maximum(m_prev, s.max(axis=-1, keepdims=True))
        alpha = jnp.exp(m_prev - m_new)
        p = jnp.exp(s - m_new)
        l_ref[...] = alpha * l_ref[...] + p.sum(axis=-1, keepdims=True)
        acc_ref[...] = alpha * acc_ref[...] + jnp.einsum(
            "hqk,hkd->hqd", p.astype(v.dtype), v,
            preferred_element_type=jnp.float32)
        m_ref[...] = m_new

    @pl.when(ki == last_ki)
    def _finalize():
        # exact reciprocal for parity with the PyTorch softmax (EUP, off-slot anyway)
        inv_l = pl.reciprocal(l_ref[...], approx=False)               # (H, tq, 1)
        out_h = acc_ref[...] * inv_l                                  # (H, tq, hd) f32
        # fused fc_out: y = sum_h out_h @ Wo^T[h*hd:(h+1)*hd, :]  (+ bias)
        y = None
        for h in range(n_head):                                       # once per q tile
            contrib = jnp.dot(out_h[h].astype(q_ref.dtype), wot_ref[h],
                              preferred_element_type=jnp.float32)     # (tq, C)
            y = contrib if y is None else y + contrib
        o_ref[0] = (y + bo_ref[...]).astype(o_ref.dtype)              # lane-dense store


# --------------------------------------------------------------------------- #
# Wrapper
# --------------------------------------------------------------------------- #
def causal_self_attention(x, wq, wk, wv, wo, bo, n_head):
    """x: (B, T, C). wq/wk/wv/wo: (C, C) PyTorch-style (out, in). bo: (C,)."""
    B, T, C = x.shape
    assert C % n_head == 0, "embed_dim must be divisible by n_head"
    hd = C // n_head
    dt = x.dtype
    itemsize = jnp.dtype(dt).itemsize
    cap = _vmem_capacity_bytes()

    tq = _choose_seq_tile(T, n_head, hd, itemsize, cap)
    tk = tq                                       # aligned q/kv tiles (diagonal-safe)
    nq = T // tq
    nk = T // tk
    kv_per_q = tq // tk

    # NOTE: the PyTorch module scales by sqrt(embed_dim), not sqrt(head_dim).
    scale = 1.0 / (float(C) ** 0.5)
    wqt = (wq.T.astype(jnp.float32) * scale).astype(dt)   # scale folded into Wq^T
    wkt = wk.T.astype(dt)
    wvt = wv.T.astype(dt)
    wot_heads = wo.T.reshape(n_head, hd, C).astype(dt)    # head h -> rows h*hd:(h+1)*hd of Wo^T
    bo2 = bo.reshape(1, C).astype(jnp.float32)

    # ---------------- pass 1: Q/K/V projections ----------------
    need_qkv = (2 * tq * C + 3 * 2 * C * C + 3 * 2 * tq * C) * itemsize
    qkv_spec = pltpu.PrefetchScalarGridSpec(
        num_scalar_prefetch=0,
        grid=(B, nq),
        in_specs=[
            pl.BlockSpec((1, tq, C), lambda b, ti: (b, ti, 0)),   # x tile only (not full T)
            pl.BlockSpec((C, C), lambda b, ti: (0, 0)),           # Wq^T (scaled), resident
            pl.BlockSpec((C, C), lambda b, ti: (0, 0)),           # Wk^T, resident
            pl.BlockSpec((C, C), lambda b, ti: (0, 0)),           # Wv^T, resident
        ],
        out_specs=[pl.BlockSpec((1, n_head, tq, hd), lambda b, ti: (b, 0, ti, 0))] * 3,
    )
    q_hds, k_hds, v_hds = pl.pallas_call(
        _qkv_proj_kernel,
        out_shape=[jax.ShapeDtypeStruct((B, n_head, T, hd), dt)] * 3,
        grid_spec=qkv_spec,
        compiler_params=pltpu.CompilerParams(
            dimension_semantics=("parallel", "parallel"),
            vmem_limit_bytes=_vmem_limit_bytes(need_qkv, cap),
        ),
    )(x, wqt, wkt, wvt)

    # ---------------- pass 2: flash attention + fused output projection ----------------
    def kv_index_map(b, qi, ki):
        # clamp skipped (above-diagonal) KV blocks to the last useful block so the
        # pipeline sees an unchanged block index and issues no extra DMA.
        last = (qi + 1) * kv_per_q - 1
        return (b, 0, jnp.minimum(ki, last), 0)

    need_attn = ((2 * tq * C + 2 * 2 * tk * C + 2 * tq * C + 2 * C * C) * itemsize
                 + 2 * C * 4                        # bias
                 + n_head * tq * (hd + 2) * 4       # acc / m / l scratch (f32)
                 + 2 * n_head * tq * tk * 4)        # live f32 score/prob intermediates

    flash_spec = pltpu.PrefetchScalarGridSpec(
        num_scalar_prefetch=0,
        grid=(B, nq, nk),
        in_specs=[
            pl.BlockSpec((1, n_head, tq, hd), lambda b, qi, ki: (b, 0, qi, 0)),
            pl.BlockSpec((1, n_head, tk, hd), kv_index_map),
            pl.BlockSpec((1, n_head, tk, hd), kv_index_map),
            pl.BlockSpec((n_head, hd, C), lambda b, qi, ki: (0, 0, 0)),   # Wo^T, resident
            pl.BlockSpec((1, C), lambda b, qi, ki: (0, 0)),               # bias, resident
        ],
        out_specs=pl.BlockSpec((1, tq, C), lambda b, qi, ki: (b, qi, 0)),
        scratch_shapes=[
            pltpu.VMEM((n_head, tq, 1), jnp.float32),    # running max m
            pltpu.VMEM((n_head, tq, 1), jnp.float32),    # running sum l
            pltpu.VMEM((n_head, tq, hd), jnp.float32),   # unnormalized output accumulator
        ],
    )
    out = pl.pallas_call(
        _flash_attn_kernel,
        out_shape=jax.ShapeDtypeStruct((B, T, C), dt),
        grid_spec=flash_spec,
        compiler_params=pltpu.CompilerParams(
            # batch and q-tile axes feed both TensorCores on v7x; only the KV
            # accumulation axis must stay sequential.
            dimension_semantics=("parallel", "parallel", "arbitrary"),
            vmem_limit_bytes=_vmem_limit_bytes(need_attn, cap),
        ),
    )(q_hds, k_hds, v_hds, wot_heads, bo2)
    return out


# --------------------------------------------------------------------------- #
# Reference + test
# --------------------------------------------------------------------------- #
def _reference(x, wq, wk, wv, wo, bo, n_head):
    """Plain JAX port of the PyTorch forward (eval mode)."""
    B, T, C = x.shape
    hd = C // n_head
    q = (x @ wq.T).reshape(B, T, n_head, hd).transpose(0, 2, 1, 3)
    k = (x @ wk.T).reshape(B, T, n_head, hd).transpose(0, 2, 1, 3)
    v = (x @ wv.T).reshape(B, T, n_head, hd).transpose(0, 2, 1, 3)
    energy = q @ k.transpose(0, 1, 3, 2)
    mask = jnp.tril(jnp.ones((T, T)))[None, None]
    energy = jnp.where(mask == 0, -jnp.inf, energy)
    attn = jax.nn.softmax(energy / (C ** 0.5), axis=-1)
    out = (attn @ v).transpose(0, 2, 1, 3).reshape(B, T, C)
    return out @ wo.T + bo


if __name__ == "__main__":
    # small, module-consistent sizes
    B, T = 2, 8
    embed_dim, n_head, block_size = 32, 4, 8

    key = jax.random.PRNGKey(0)
    kx, kq, kk, kv, ko, kb = jax.random.split(key, 6)
    x = jax.random.normal(kx, (B, T, embed_dim), dtype=jnp.float32)
    # deterministic "Linear" parameters (PyTorch weight layout: (out, in))
    wq = jax.random.normal(kq, (embed_dim, embed_dim), dtype=jnp.float32) * 0.05
    wk = jax.random.normal(kk, (embed_dim, embed_dim), dtype=jnp.float32) * 0.05
    wv = jax.random.normal(kv, (embed_dim, embed_dim), dtype=jnp.float32) * 0.05
    wo = jax.random.normal(ko, (embed_dim, embed_dim), dtype=jnp.float32) * 0.05
    bo = jax.random.normal(kb, (embed_dim,), dtype=jnp.float32) * 0.05

    out = causal_self_attention(x, wq, wk, wv, wo, bo, n_head)
    out = jax.block_until_ready(out)

    ref = _reference(x, wq, wk, wv, wo, bo, n_head)
    assert out.shape == (B, T, embed_dim)
    assert jnp.allclose(out, ref, atol=2e-3, rtol=2e-3), "mismatch vs reference"

    print("KERNEL_OK")
</pallas_src>

<mosaic_0001>
module attributes {stable_mosaic.version = 11 : i64} {
  func.func @_qkv_proj_kernel(%arg0: i32, %arg1: i32, %arg2: memref<1x8x32xf32, #tpu.memory_space<vmem>>, %arg3: memref<32x32xf32, #tpu.memory_space<vmem>>, %arg4: memref<32x32xf32, #tpu.memory_space<vmem>>, %arg5: memref<32x32xf32, #tpu.memory_space<vmem>>, %arg6: memref<1x4x8x8xf32, #tpu.memory_space<vmem>>, %arg7: memref<1x4x8x8xf32, #tpu.memory_space<vmem>>, %arg8: memref<1x4x8x8xf32, #tpu.memory_space<vmem>>) attributes {dimension_semantics = [#tpu.dimension_semantics<parallel>, #tpu.dimension_semantics<parallel>], iteration_bounds = array<i64: 2, 1>, scalar_prefetch = 0 : i64, scratch_operands = 0 : i64, tpu.core_type = #tpu.core_type<tc>, window_params = [{transform_indices = @transform_0, window_bounds = array<i64: 1, 8, 32>}, {pipeline_mode = #tpu.pipeline_mode<synchronous>, transform_indices = @transform_1, window_bounds = array<i64: 32, 32>}, {pipeline_mode = #tpu.pipeline_mode<synchronous>, transform_indices = @transform_2, window_bounds = array<i64: 32, 32>}, {pipeline_mode = #tpu.pipeline_mode<synchronous>, transform_indices = @transform_3, window_bounds = array<i64: 32, 32>}, {transform_indices = @transform_4, window_bounds = array<i64: 1, 4, 8, 8>}, {transform_indices = @transform_5, window_bounds = array<i64: 1, 4, 8, 8>}, {transform_indices = @transform_6, window_bounds = array<i64: 1, 4, 8, 8>}]} {
    %c0 = arith.constant 0 : index
    %c0_0 = arith.constant 0 : index
    %c0_1 = arith.constant 0 : index
    %0 = vector.load %arg2[%c0, %c0_0, %c0_1] : memref<1x8x32xf32, #tpu.memory_space<vmem>>, vector<1x8x32xf32>
    %1 = vector.shape_cast %0 : vector<1x8x32xf32> to vector<8x32xf32>
    %c0_2 = arith.constant 0 : index
    %c0_3 = arith.constant 0 : index
    %2 = vector.load %arg3[%c0_2, %c0_3] : memref<32x32xf32, #tpu.memory_space<vmem>>, vector<32x32xf32>
    %cst = arith.constant dense<0.000000e+00> : vector<8x32xf32>
    %3 = tpu.matmul %1, %2, %cst {dimension_numbers = #tpu.dot_dimension_numbers<[1], [0], [0], [1], [0, 0, 1, 1], [], []>} : vector<8x32xf32>, vector<32x32xf32>, vector<8x32xf32> -> vector<8x32xf32>
    %c0_4 = arith.constant 0 : index
    %c0_5 = arith.constant 0 : index
    %4 = vector.load %arg4[%c0_4, %c0_5] : memref<32x32xf32, #tpu.memory_space<vmem>>, vector<32x32xf32>
    %cst_6 = arith.constant dense<0.000000e+00> : vector<8x32xf32>
    %5 = tpu.matmul %1, %4, %cst_6 {dimension_numbers = #tpu.dot_dimension_numbers<[1], [0], [0], [1], [0, 0, 1, 1], [], []>} : vector<8x32xf32>, vector<32x32xf32>, vector<8x32xf32> -> vector<8x32xf32>
    %c0_7 = arith.constant 0 : index
    %c0_8 = arith.constant 0 : index
    %6 = vector.load %arg5[%c0_7, %c0_8] : memref<32x32xf32, #tpu.memory_space<vmem>>, vector<32x32xf32>
    %cst_9 = arith.constant dense<0.000000e+00> : vector<8x32xf32>
    %7 = tpu.matmul %1, %6, %cst_9 {dimension_numbers = #tpu.dot_dimension_numbers<[1], [0], [0], [1], [0, 0, 1, 1], [], []>} : vector<8x32xf32>, vector<32x32xf32>, vector<8x32xf32> -> vector<8x32xf32>
    %8 = vector.extract_strided_slice %3 {offsets = [0, 0], sizes = [8, 8], strides = [1, 1]} : vector<8x32xf32> to vector<8x8xf32>
    %c0_10 = arith.constant 0 : index
    %c0_11 = arith.constant 0 : index
    %c0_12 = arith.constant 0 : index
    %c0_13 = arith.constant 0 : index
    %9 = vector.load %arg6[%c0_10, %c0_11, %c0_12, %c0_13] : memref<1x4x8x8xf32, #tpu.memory_space<vmem>>, vector<1x1x8x8xf32>
    %10 = vector.shape_cast %9 : vector<1x1x8x8xf32> to vector<8x8xf32>
    %11 = vector.shape_cast %8 : vector<8x8xf32> to vector<1x1x8x8xf32>
    tpu.vector_store %arg6[%c0_10, %c0_11, %c0_12, %c0_13], %11 {strides = array<i32>} : memref<1x4x8x8xf32, #tpu.memory_space<vmem>>, vector<1x1x8x8xf32>,
    %12 = vector.extract_strided_slice %5 {offsets = [0, 0], sizes = [8, 8], strides = [1, 1]} : vector<8x32xf32> to vector<8x8xf32>
    %c0_14 = arith.constant 0 : index
    %c0_15 = arith.constant 0 : index
    %c0_16 = arith.constant 0 : index
    %c0_17 = arith.constant 0 : index
    %13 = vector.load %arg7[%c0_14, %c0_15, %c0_16, %c0_17] : memref<1x4x8x8xf32, #tpu.memory_space<vmem>>, vector<1x1x8x8xf32>
    %14 = vector.shape_cast %13 : vector<1x1x8x8xf32> to vector<8x8xf32>
    %15 = vector.shape_cast %12 : vector<8x8xf32> to vector<1x1x8x8xf32>
    tpu.vector_store %arg7[%c0_14, %c0_15, %c0_16, %c0_17], %15 {strides = array<i32>} : memref<1x4x8x8xf32, #tpu.memory_space<vmem>>, vector<1x1x8x8xf32>,
    %16 = vector.extract_strided_slice %7 {offsets = [0, 0], sizes = [8, 8], strides = [1, 1]} : vector<8x32xf32> to vector<8x8xf32>
    %c0_18 = arith.constant 0 : index
    %c0_19 = arith.constant 0 : index
    %c0_20 = arith.constant 0 : index
    %c0_21 = arith.constant 0 : index
    %17 = vector.load %arg8[%c0_18, %c0_19, %c0_20, %c0_21] : memref<1x4x8x8xf32, #tpu.memory_space<vmem>>, vector<1x1x8x8xf32>
    %18 = vector.shape_cast %17 : vector<1x1x8x8xf32> to vector<8x8xf32>
    %19 = vector.shape_cast %16 : vector<8x8xf32> to vector<1x1x8x8xf32>
    tpu.vector_store %arg8[%c0_18, %c0_19, %c0_20, %c0_21], %19 {strides = array<i32>} : memref<1x4x8x8xf32, #tpu.memory_space<vmem>>, vector<1x1x8x8xf32>,
    %20 = vector.extract_strided_slice %3 {offsets = [0, 8], sizes = [8, 8], strides = [1, 1]} : vector<8x32xf32> to vector<8x8xf32>
    %c0_22 = arith.constant 0 : index
    %c1 = arith.constant 1 : index
    %c0_23 = arith.constant 0 : index
    %c0_24 = arith.constant 0 : index
    %21 = vector.load %arg6[%c0_22, %c1, %c0_23, %c0_24] : memref<1x4x8x8xf32, #tpu.memory_space<vmem>>, vector<1x1x8x8xf32>
    %22 = vector.shape_cast %21 : vector<1x1x8x8xf32> to vector<8x8xf32>
    %23 = vector.shape_cast %20 : vector<8x8xf32> to vector<1x1x8x8xf32>
    tpu.vector_store %arg6[%c0_22, %c1, %c0_23, %c0_24], %23 {strides = array<i32>} : memref<1x4x8x8xf32, #tpu.memory_space<vmem>>, vector<1x1x8x8xf32>,
    %24 = vector.extract_strided_slice %5 {offsets = [0, 8], sizes = [8, 8], strides = [1, 1]} : vector<8x32xf32> to vector<8x8xf32>
    %c0_25 = arith.constant 0 : index
    %c1_26 = arith.constant 1 : index
    %c0_27 = arith.constant 0 : index
    %c0_28 = arith.constant 0 : index
    %25 = vector.load %arg7[%c0_25, %c1_26, %c0_27, %c0_28] : memref<1x4x8x8xf32, #tpu.memory_space<vmem>>, vector<1x1x8x8xf32>
    %26 = vector.shape_cast %25 : vector<1x1x8x8xf32> to vector<8x8xf32>
    %27 = vector.shape_cast %24 : vector<8x8xf32> to vector<1x1x8x8xf32>
    tpu.vector_store %arg7[%c0_25, %c1_26, %c0_27, %c0_28], %27 {strides = array<i32>} : memref<1x4x8x8xf32, #tpu.memory_space<vmem>>, vector<1x1x8x8xf32>,
    %28 = vector.extract_strided_slice %7 {offsets = [0, 8], sizes = [8, 8], strides = [1, 1]} : vector<8x32xf32> to vector<8x8xf32>
    %c0_29 = arith.constant 0 : index
    %c1_30 = arith.constant 1 : index
    %c0_31 = arith.constant 0 : index
    %c0_32 = arith.constant 0 : index
    %29 = vector.load %arg8[%c0_29, %c1_30, %c0_31, %c0_32] : memref<1x4x8x8xf32, #tpu.memory_space<vmem>>, vector<1x1x8x8xf32>
    %30 = vector.shape_cast %29 : vector<1x1x8x8xf32> to vector<8x8xf32>
    %31 = vector.shape_cast %28 : vector<8x8xf32> to vector<1x1x8x8xf32>
    tpu.vector_store %arg8[%c0_29, %c1_30, %c0_31, %c0_32], %31 {strides = array<i32>} : memref<1x4x8x8xf32, #tpu.memory_space<vmem>>, vector<1x1x8x8xf32>,
    %32 = vector.extract_strided_slice %3 {offsets = [0, 16], sizes = [8, 8], strides = [1, 1]} : vector<8x32xf32> to vector<8x8xf32>
    %c0_33 = arith.constant 0 : index
    %c2 = arith.constant 2 : index
    %c0_34 = arith.constant 0 : index
    %c0_35 = arith.constant 0 : index
    %33 = vector.load %arg6[%c0_33, %c2, %c0_34, %c0_35] : memref<1x4x8x8xf32, #tpu.memory_space<vmem>>, vector<1x1x8x8xf32>
    %34 = vector.shape_cast %33 : vector<1x1x8x8xf32> to vector<8x8xf32>
    %35 = vector.shape_cast %32 : vector<8x8xf32> to vector<1x1x8x8xf32>
    tpu.vector_store %arg6[%c0_33, %c2, %c0_34, %c0_35], %35 {strides = array<i32>} : memref<1x4x8x8xf32, #tpu.memory_space<vmem>>, vector<1x1x8x8xf32>,
    %36 = vector.extract_strided_slice %5 {offsets = [0, 16], sizes = [8, 8], strides = [1, 1]} : vector<8x32xf32> to vector<8x8xf32>
    %c0_36 = arith.constant 0 : index
    %c2_37 = arith.constant 2 : index
    %c0_38 = arith.constant 0 : index
    %c0_39 = arith.constant 0 : index
    %37 = vector.load %arg7[%c0_36, %c2_37, %c0_38, %c0_39] : memref<1x4x8x8xf32, #tpu.memory_space<vmem>>, vector<1x1x8x8xf32>
    %38 = vector.shape_cast %37 : vector<1x1x8x8xf32> to vector<8x8xf32>
    %39 = vector.shape_cast %36 : vector<8x8xf32> to vector<1x1x8x8xf32>
    tpu.vector_store %arg7[%c0_36, %c2_37, %c0_38, %c0_39], %39 {strides = array<i32>} : memref<1x4x8x8xf32, #tpu.memory_space<vmem>>, vector<1x1x8x8xf32>,
    %40 = vector.extract_strided_slice %7 {offsets = [0, 16], sizes = [8, 8], strides = [1, 1]} : vector<8x32xf32> to vector<8x8xf32>
    %c0_40 = arith.constant 0 : index
    %c2_41 = arith.constant 2 : index
    %c0_42 = arith.constant 0 : index
    %c0_43 = arith.constant 0 : index
    %41 = vector.load %arg8[%c0_40, %c2_41, %c0_42, %c0_43] : memref<1x4x8x8xf32, #tpu.memory_space<vmem>>, vector<1x1x8x8xf32>
    %42 = vector.shape_cast %41 : vector<1x1x8x8xf32> to vector<8x8xf32>
    %43 = vector.shape_cast %40 : vector<8x8xf32> to vector<1x1x8x8xf32>
    tpu.vector_store %arg8[%c0_40, %c2_41, %c0_42, %c0_43], %43 {strides = array<i32>} : memref<1x4x8x8xf32, #tpu.memory_space<vmem>>, vector<1x1x8x8xf32>,
    %44 = vector.extract_strided_slice %3 {offsets = [0, 24], sizes = [8, 8], strides = [1, 1]} : vector<8x32xf32> to vector<8x8xf32>
    %c0_44 = arith.constant 0 : index
    %c3 = arith.constant 3 : index
    %c0_45 = arith.constant 0 : index
    %c0_46 = arith.constant 0 : index
    %45 = vector.load %arg6[%c0_44, %c3, %c0_45, %c0_46] : memref<1x4x8x8xf32, #tpu.memory_space<vmem>>, vector<1x1x8x8xf32>
    %46 = vector.shape_cast %45 : vector<1x1x8x8xf32> to vector<8x8xf32>
    %47 = vector.shape_cast %44 : vector<8x8xf32> to vector<1x1x8x8xf32>
    tpu.vector_store %arg6[%c0_44, %c3, %c0_45, %c0_46], %47 {strides = array<i32>} : memref<1x4x8x8xf32, #tpu.memory_space<vmem>>, vector<1x1x8x8xf32>,
    %48 = vector.extract_strided_slice %5 {offsets = [0, 24], sizes = [8, 8], strides = [1, 1]} : vector<8x32xf32> to vector<8x8xf32>
    %c0_47 = arith.constant 0 : index
    %c3_48 = arith.constant 3 : index
    %c0_49 = arith.constant 0 : index
    %c0_50 = arith.constant 0 : index
    %49 = vector.load %arg7[%c0_47, %c3_48, %c0_49, %c0_50] : memref<1x4x8x8xf32, #tpu.memory_space<vmem>>, vector<1x1x8x8xf32>
    %50 = vector.shape_cast %49 : vector<1x1x8x8xf32> to vector<8x8xf32>
    %51 = vector.shape_cast %48 : vector<8x8xf32> to vector<1x1x8x8xf32>
    tpu.vector_store %arg7[%c0_47, %c3_48, %c0_49, %c0_50], %51 {strides = array<i32>} : memref<1x4x8x8xf32, #tpu.memory_space<vmem>>, vector<1x1x8x8xf32>,
    %52 = vector.extract_strided_slice %7 {offsets = [0, 24], sizes = [8, 8], strides = [1, 1]} : vector<8x32xf32> to vector<8x8xf32>
    %c0_51 = arith.constant 0 : index
    %c3_52 = arith.constant 3 : index
    %c0_53 = arith.constant 0 : index
    %c0_54 = arith.constant 0 : index
    %53 = vector.load %arg8[%c0_51, %c3_52, %c0_53, %c0_54] : memref<1x4x8x8xf32, #tpu.memory_space<vmem>>, vector<1x1x8x8xf32>
    %54 = vector.shape_cast %53 : vector<1x1x8x8xf32> to vector<8x8xf32>
    %55 = vector.shape_cast %52 : vector<8x8xf32> to vector<1x1x8x8xf32>
    tpu.vector_store %arg8[%c0_51, %c3_52, %c0_53, %c0_54], %55 {strides = array<i32>} : memref<1x4x8x8xf32, #tpu.memory_space<vmem>>, vector<1x1x8x8xf32>,
    return
  }
  func.func @transform_0(%arg0: i32, %arg1: i32) -> (i32, i32, i32) {
    %c0_i32 = arith.constant 0 : i32
    %c0_i32_0 = arith.constant 0 : i32
    return %arg0, %arg1, %c0_i32 : i32, i32, i32
  }
  func.func @transform_1(%arg0: i32, %arg1: i32) -> (i32, i32) {
    %c0_i32 = arith.constant 0 : i32
    %c0_i32_0 = arith.constant 0 : i32
    %c0_i32_1 = arith.constant 0 : i32
    return %c0_i32, %c0_i32_0 : i32, i32
  }
  func.func @transform_2(%arg0: i32, %arg1: i32) -> (i32, i32) {
    %c0_i32 = arith.constant 0 : i32
    %c0_i32_0 = arith.constant 0 : i32
    %c0_i32_1 = arith.constant 0 : i32
    return %c0_i32, %c0_i32_0 : i32, i32
  }
  func.func @transform_3(%arg0: i32, %arg1: i32) -> (i32, i32) {
    %c0_i32 = arith.constant 0 : i32
    %c0_i32_0 = arith.constant 0 : i32
    %c0_i32_1 = arith.constant 0 : i32
    return %c0_i32, %c0_i32_0 : i32, i32
  }
  func.func @transform_4(%arg0: i32, %arg1: i32) -> (i32, i32, i32, i32) {
    %c0_i32 = arith.constant 0 : i32
    %c0_i32_0 = arith.constant 0 : i32
    %c0_i32_1 = arith.constant 0 : i32
    return %arg0, %c0_i32, %arg1, %c0_i32_0 : i32, i32, i32, i32
  }
  func.func @transform_5(%arg0: i32, %arg1: i32) -> (i32, i32, i32, i32) {
    %c0_i32 = arith.constant 0 : i32
    %c0_i32_0 = arith.constant 0 : i32
    %c0_i32_1 = arith.constant 0 : i32
    return %arg0, %c0_i32, %arg1, %c0_i32_0 : i32, i32, i32, i32
  }
  func.func @transform_6(%arg0: i32, %arg1: i32) -> (i32, i32, i32, i32) {
    %c0_i32 = arith.constant 0 : i32
    %c0_i32_0 = arith.constant 0 : i32
    %c0_i32_1 = arith.constant 0 : i32
    return %arg0, %c0_i32, %arg1, %c0_i32_0 : i32, i32, i32, i32
  }
}

</mosaic_0001>

<llo_original>
// kernel: tpu_custom_call.1
$region0: #{tpu_custom_call.1}
  #allocation0 [shape = 'u32[]', space=smem, size = 0x4, offset = 0x4, fixed_abs, tag = 'smem constant byte address 0x4 - core index']
  #allocation1 [shape = 'u32[144,128]{1,0:T(1,128)}', space=vmem, size = 0x12000, scoped, tag = 'internal scratch']
  %s0 = inlined_call_operand.hbm [shape: f32[2,8,32], index: 0, kind: input, shape index: {}]
  %s1 = inlined_call_operand.hbm [shape: f32[32,32], index: 1, kind: input, shape index: {}]
  %s2 = inlined_call_operand.hbm [shape: f32[32,32], index: 2, kind: input, shape index: {}]
  %s3 = inlined_call_operand.hbm [shape: f32[32,32], index: 3, kind: input, shape index: {}]
  %s4 = inlined_call_operand.hbm [shape: f32[2,4,8,8], index: 4, kind: output, shape index: {0}]
  %s5 = inlined_call_operand.hbm [shape: f32[2,4,8,8], index: 5, kind: output, shape index: {1}]
  %s6 = inlined_call_operand.hbm [shape: f32[2,4,8,8], index: 6, kind: output, shape index: {2}]
  %7 = xla_tuple %s4, %s5, %s6
  %s8 = sld [smem:[#allocation0]]
  $region81: #{tpu_custom_call.1} parent=0
    _
  %s10 = ssub.s32 1, %s8
  %s11 = scalar_select 0, %s10, %s8
  $region1: #{tpu_custom_call.1} parent=0
    #allocation2 [shape = 'u8[8192]{0}', space=vmem, size = 0x2000, scoped, tag = 'input window, operand 0']
    #allocation3 [shape = 's32[2]{0}', space=sflag, size = 0x8, scoped, tag = 'scoped memory for tpu_custom_call.1']
    #allocation4 [shape = 's32[2]{0}', space=sflag, size = 0x8, scoped, tag = 'scoped memory for tpu_custom_call.1']
    #allocation5 [shape = 'u8[16384]{0}', space=vmem, size = 0x4000, scoped, tag = 'input window, operand 1, single buffered']
    #allocation6 [shape = 's32[1]{0}', space=sflag, size = 0x4, scoped, tag = 'scoped memory for tpu_custom_call.1']
    #allocation7 [shape = 'u8[16384]{0}', space=vmem, size = 0x4000, scoped, tag = 'input window, operand 2, single buffered']
    #allocation8 [shape = 'u8[16384]{0}', space=vmem, size = 0x4000, scoped, tag = 'input window, operand 3, single buffered']
    #allocation9 [shape = 's32[1]{0}', space=sflag, size = 0x4, scoped, tag = 'scoped memory for tpu_custom_call.1']
    #allocation10 [shape = 'u8[32768]{0}', space=vmem, size = 0x8000, scoped, tag = 'output window, operand 0']
    #allocation11 [shape = 'u8[32768]{0}', space=vmem, size = 0x8000, scoped, tag = 'output window, operand 1']
    #allocation12 [shape = 's32[2]{0}', space=sflag, size = 0x8, scoped, tag = 'scoped memory for tpu_custom_call.1']
    #allocation13 [shape = 'u8[32768]{0}', space=vmem, size = 0x8000, scoped, tag = 'output window, operand 2']
    %12 = vsyncpa [#allocation3], 0
    %s13 = scalar_lea.sflag [#allocation3], 1
    %14 = vsyncpa %s13, 0
    %15 = vsyncpa [#allocation6], 0
    %16 = vsyncpa [#allocation9], 0
    %17 = vsyncpa [#allocation4], 0
    %s18 = scalar_lea.sflag [#allocation4], 1
    %19 = vsyncpa %s18, 0
    %20 = vsyncpa [#allocation12], 0
    %s21 = scalar_lea.sflag [#allocation12], 1
    %22 = vsyncpa %s21, 0
    loop: start=0, step=1, limit=4
    $region2: #{tpu_custom_call.1} parent=1 // loop_pre_header
      _
    $region3: #{tpu_custom_call.1} parent=1 // loop_header
      %s24 = sphi 0, %s28
      %p25 = scmp.ge.s32.totalorder %s24, 4
      %s31 = sphi 0, %s43
      %s32 = sphi 0, %s39
      %s33 = sphi 0, %s31
      %s34 = sphi 0, %s32
      %s35 = sphi 0, %s33
      %s36 = sphi 0, %s34
      %s48 = sphi 0, %s50
      %s51 = sphi 0, %s48
      %s52 = sphi 0, %s51
      %s68 = sphi 0, %s52
      %s72 = sphi 0, %s72
      %s74 = sphi 0, %s72
      %s75 = sphi 0, %s74
      %s89 = sphi 0, %s75
      %s93 = sphi 0, %s93
      %s95 = sphi 0, %s93
      %s96 = sphi 0, %s95
      %s110 = sphi 0, %s96
      %s114 = sphi 0, %s114
      %s116 = sphi 0, %s114
      %s117 = sphi 0, %s116
      %s131 = sphi 0, %s117
      %s139 = sphi 0, %s141
      %s142 = sphi 0, %s139
      %s143 = sphi 0, %s142
      %s159 = sphi 0, %s143
      %s167 = sphi 0, %s169
      %s170 = sphi 0, %s167
      %s171 = sphi 0, %s170
      %s187 = sphi 0, %s171
      %s195 = sphi 0, %s197
      %s198 = sphi 0, %s195
      %s199 = sphi 0, %s198
      %s215 = sphi 0, %s199
    $region4: #{tpu_custom_call.1} parent=1 // loop_header_branch
      %27 = sbr.rel (%p25) target = $region8
    $region5: #{tpu_custom_call.1} parent=1 // loop_body
      %s29 = ssub.s32 %s24, 1
      %s30 = ssub.s32 %s24, 2
      %s37 = sadd.s32 1, %s32
      %p38 = scmp.ge.s32.totalorder %s37, 1
      %s39 = scalar_select %p38, 0, %s37
      %s40 = sadd.s32 1, %s31
      %s41 = scalar_select %p38, %s40, %s31
      %p42 = scmp.ge.s32.totalorder %s41, 2
      %s43 = scalar_select %p42, 0, %s41
      %s44 = ssub.s32 %s31, %s43
      %s45 = ssub.s32 %s32, %s39
      %s46 = sor.u32 %s44, %s45
      %p47 = scmp.eq.s32.totalorder %s46, 0
      %s49 = sadd.s32 %s48, 1
      %s50 = scalar_select %p47, %s48, %s49
      %p53 = pneg %p47
      %p54 = scmp.eq.s32.totalorder %s24, 1
      %p55 = por %p53, %p54
      %p56 = scmp.ne.s32.totalorder %s48, %s51
      %p57 = scmp.eq.s32.totalorder %s24, 0
      %p58 = por %p56, %p57
      %p59 = scmp.ne.s32.totalorder %s48, %s51
      %p60 = scmp.eq.s32.totalorder %s29, 1
      %p61 = por %p59, %p60
      %p62 = scmp.ne.s32.totalorder %s51, %s52
      %p63 = scmp.eq.s32.totalorder %s29, 0
      %p64 = por %p62, %p63
      %p65 = scmp.ne.s32.totalorder %s51, %s52
      %p66 = scmp.eq.s32.totalorder %s30, 1
      %p67 = por %p65, %p66
      %p69 = scmp.ne.s32.totalorder %s52, %s68
      %p70 = scmp.eq.s32.totalorder %s30, 0
      %p71 = por %p69, %p70
      %s73 = sadd.s32 %s72, 1
      %p76 = scmp.eq.s32.totalorder %s24, 1
      %p77 = scmp.ne.s32.totalorder %s72, %s74
      %p78 = scmp.eq.s32.totalorder %s24, 0
      %p79 = por %p77, %p78
      %p80 = scmp.ne.s32.totalorder %s72, %s74
      %p81 = scmp.eq.s32.totalorder %s29, 1
      %p82 = por %p80, %p81
      %p83 = scmp.ne.s32.totalorder %s74, %s75
      %p84 = scmp.eq.s32.totalorder %s29, 0
      %p85 = por %p83, %p84
      %p86 = scmp.ne.s32.totalorder %s74, %s75
      %p87 = scmp.eq.s32.totalorder %s30, 1
      %p88 = por %p86, %p87
      %p90 = scmp.ne.s32.totalorder %s75, %s89
      %p91 = scmp.eq.s32.totalorder %s30, 0
      %p92 = por %p90, %p91
      %s94 = sadd.s32 %s93, 1
      %p97 = scmp.eq.s32.totalorder %s24, 1
      %p98 = scmp.ne.s32.totalorder %s93, %s95
      %p99 = scmp.eq.s32.totalorder %s24, 0
      %p100 = por %p98, %p99
      %p101 = scmp.ne.s32.totalorder %s93, %s95
      %p102 = scmp.eq.s32.totalorder %s29, 1
      %p103 = por %p101, %p102
      %p104 = scmp.ne.s32.totalorder %s95, %s96
      %p105 = scmp.eq.s32.totalorder %s29, 0
      %p106 = por %p104, %p105
      %p107 = scmp.ne.s32.totalorder %s95, %s96
      %p108 = scmp.eq.s32.totalorder %s30, 1
      %p109 = por %p107, %p108
      %p111 = scmp.ne.s32.totalorder %s96, %s110
      %p112 = scmp.eq.s32.totalorder %s30, 0
      %p113 = por %p111, %p112
      %s115 = sadd.s32 %s114, 1
      %p118 = scmp.eq.s32.totalorder %s24, 1
      %p119 = scmp.ne.s32.totalorder %s114, %s116
      %p120 = scmp.eq.s32.totalorder %s24, 0
      %p121 = por %p119, %p120
      %p122 = scmp.ne.s32.totalorder %s114, %s116
      %p123 = scmp.eq.s32.totalorder %s29, 1
      %p124 = por %p122, %p123
      %p125 = scmp.ne.s32.totalorder %s116, %s117
      %p126 = scmp.eq.s32.totalorder %s29, 0
      %p127 = por %p125, %p126
      %p128 = scmp.ne.s32.totalorder %s116, %s117
      %p129 = scmp.eq.s32.totalorder %s30, 1
      %p130 = por %p128, %p129
      %p132 = scmp.ne.s32.totalorder %s117, %s131
      %p133 = scmp.eq.s32.totalorder %s30, 0
      %p134 = por %p132, %p133
      %s135 = ssub.s32 %s31, %s43
      %s136 = ssub.s32 %s32, %s39
      %s137 = sor.u32 %s135, %s136
      %p138 = scmp.eq.s32.totalorder %s137, 0
      %s140 = sadd.s32 %s139, 1
      %s141 = scalar_select %p138, %s139, %s140
      %p144 = pneg %p138
      %p145 = scmp.eq.s32.totalorder %s24, 1
      %p146 = por %p144, %p145
      %p147 = scmp.ne.s32.totalorder %s139, %s142
      %p148 = scmp.eq.s32.totalorder %s24, 0
      %p149 = por %p147, %p148
      %p150 = scmp.ne.s32.totalorder %s139, %s142
      %p151 = scmp.eq.s32.totalorder %s29, 1
      %p152 = por %p150, %p151
      %p153 = scmp.ne.s32.totalorder %s142, %s143
      %p154 = scmp.eq.s32.totalorder %s29, 0
      %p155 = por %p153, %p154
      %p156 = scmp.ne.s32.totalorder %s142, %s143
      %p157 = scmp.eq.s32.totalorder %s30, 1
      %p158 = por %p156, %p157
      %p160 = scmp.ne.s32.totalorder %s143, %s159
      %p161 = scmp.eq.s32.totalorder %s30, 0
      %p162 = por %p160, %p161
      %s163 = ssub.s32 %s31, %s43
      %s164 = ssub.s32 %s32, %s39
      %s165 = sor.u32 %s163, %s164
      %p166 = scmp.eq.s32.totalorder %s165, 0
      %s168 = sadd.s32 %s167, 1
      %s169 = scalar_select %p166, %s167, %s168
      %p172 = pneg %p166
      %p173 = scmp.eq.s32.totalorder %s24, 1
      %p174 = por %p172, %p173
      %p175 = scmp.ne.s32.totalorder %s167, %s170
      %p176 = scmp.eq.s32.totalorder %s24, 0
      %p177 = por %p175, %p176
      %p178 = scmp.ne.s32.totalorder %s167, %s170
      %p179 = scmp.eq.s32.totalorder %s29, 1
      %p180 = por %p178, %p179
      %p181 = scmp.ne.s32.totalorder %s170, %s171
      %p182 = scmp.eq.s32.totalorder %s29, 0
      %p183 = por %p181, %p182
      %p184 = scmp.ne.s32.totalorder %s170, %s171
      %p185 = scmp.eq.s32.totalorder %s30, 1
      %p186 = por %p184, %p185
      %p188 = scmp.ne.s32.totalorder %s171, %s187
      %p189 = scmp.eq.s32.totalorder %s30, 0
      %p190 = por %p188, %p189
      %s191 = ssub.s32 %s31, %s43
      %s192 = ssub.s32 %s32, %s39
      %s193 = sor.u32 %s191, %s192
      %p194 = scmp.eq.s32.totalorder %s193, 0
      %s196 = sadd.s32 %s195, 1
      %s197 = scalar_select %p194, %s195, %s196
      %p200 = pneg %p194
      %p201 = scmp.eq.s32.totalorder %s24, 1
      %p202 = por %p200, %p201
      %p203 = scmp.ne.s32.totalorder %s195, %s198
      %p204 = scmp.eq.s32.totalorder %s24, 0
      %p205 = por %p203, %p204
      %p206 = scmp.ne.s32.totalorder %s195, %s198
      %p207 = scmp.eq.s32.totalorder %s29, 1
      %p208 = por %p206, %p207
      %p209 = scmp.ne.s32.totalorder %s198, %s199
      %p210 = scmp.eq.s32.totalorder %s29, 0
      %p211 = por %p209, %p210
      %p212 = scmp.ne.s32.totalorder %s198, %s199
      %p213 = scmp.eq.s32.totalorder %s30, 1
      %p214 = por %p212, %p213
      %p216 = scmp.ne.s32.totalorder %s199, %s215
      %p217 = scmp.eq.s32.totalorder %s30, 0
      %p218 = por %p216, %p217
      %p219 = scmp.le.s32.totalorder 1, %s24
      %p220 = scmp.lt.s32.totalorder %s24, 3
      %p221 = pnand %p219, %p220
      %p222 = pneg %p221
      // Predicated region
      $region9: #{tpu_custom_call.1} parent=5 // pred_check
        _
      $region10: #{tpu_custom_call.1} parent=5 // pred_check_branch
        %224 = sbr.rel (%p221) target = $region12
      $region11: #{tpu_custom_call.1} parent=5 // pred_region
        %s225 = ssub.s32 %s24, 1
        // Predicated region
        $region13: #{tpu_custom_call.1} parent=11 // pred_check
          %p226 = pneg %p85
        $region14: #{tpu_custom_call.1} parent=11 // pred_check_branch
          %228 = sbr.rel (%p226) target = $region16
        $region15: #{tpu_custom_call.1} parent=11 // pred_region
          %s230 = ssub.s32 512, 512
          %231 = vsyncadd [#allocation6], %s230
          %s232 = sshll.u32 [#allocation5], 4
          %s233 = int_to_ptr.vmem [resolvable:$true] %s232
          %238 = dma.hbm_to_vmem [thread:$0]  %s1, 512, %s233, [#allocation6], 128, 128, 8
        $region16: #{tpu_custom_call.1} parent=11 // pred_fallthru
          _
        // Predicated region
        $region17: #{tpu_custom_call.1} parent=11 // pred_check
          %p239 = pneg %p106
        $region18: #{tpu_custom_call.1} parent=11 // pred_check_branch
          %241 = sbr.rel (%p239) target = $region20
        $region19: #{tpu_custom_call.1} parent=11 // pred_region
          %s243 = ssub.s32 512, 512
          %244 = vsyncadd [#allocation6], %s243
          %s245 = sshll.u32 [#allocation7], 4
          %s246 = int_to_ptr.vmem [resolvable:$true] %s245
          %251 = dma.hbm_to_vmem [thread:$0]  %s2, 512, %s246, [#allocation6], 128, 128, 8
        $region20: #{tpu_custom_call.1} parent=11 // pred_fallthru
          _
        // Predicated region
        $region21: #{tpu_custom_call.1} parent=11 // pred_check
          %p252 = pneg %p127
        $region22: #{tpu_custom_call.1} parent=11 // pred_check_branch
          %254 = sbr.rel (%p252) target = $region24
        $region23: #{tpu_custom_call.1} parent=11 // pred_region
          %s256 = ssub.s32 512, 512
          %257 = vsyncadd [#allocation9], %s256
          %s258 = sshll.u32 [#allocation8], 4
          %s259 = int_to_ptr.vmem [resolvable:$true] %s258
          %264 = dma.hbm_to_vmem [thread:$0]  %s3, 512, %s259, [#allocation9], 128, 128, 8
        $region24: #{tpu_custom_call.1} parent=11 // pred_fallthru
          _
      $region12: #{tpu_custom_call.1} parent=5 // pred_fallthru
        _
      %p265 = scmp.lt.s32.totalorder %s24, 2
      // Predicated region
      $region25: #{tpu_custom_call.1} parent=5 // pred_check
        %p266 = pneg %p265
      $region26: #{tpu_custom_call.1} parent=5 // pred_check_branch
        %268 = sbr.rel (%p266) target = $region28
      $region27: #{tpu_custom_call.1} parent=5 // pred_region
        // Predicated region
        $region29: #{tpu_custom_call.1} parent=27 // pred_check
          %p269 = pneg %p58
        $region30: #{tpu_custom_call.1} parent=27 // pred_check_branch
          %271 = sbr.rel (%p269) target = $region32
        $region31: #{tpu_custom_call.1} parent=27 // pred_region
          %s272 = sand.u32 %s48, 1
          %s273 = scalar_lea.sflag [#allocation3], %s272
          %s274 = sand.u32 %s48, 1
          %s275 = smul.addr %s274, 8
          %s276 = scalar_lea.vmem [#allocation2], %s275
          %s278 = ssub.s32 128, 128
          %279 = vsyncadd %s273, %s278
          %s280 = sadd.s32 %s32, %s31
          %s281 = smul.addr %s280, 128
          %s282 = scalar_lea.hbm %s0, %s281
          %s284 = sshll.u32 %s276, 4
          %s285 = int_to_ptr.vmem [resolvable:$true] %s284
          %287 = dma.hbm_to_vmem [thread:$0]  %s282, 128, %s285, %s273
        $region32: #{tpu_custom_call.1} parent=27 // pred_fallthru
          _
      $region28: #{tpu_custom_call.1} parent=5 // pred_fallthru
        _
      %p288 = scmp.le.s32.totalorder 1, %s24
      %p289 = scmp.lt.s32.totalorder %s24, 3
      %p290 = pnand %p288, %p289
      %p291 = pneg %p290
      // Predicated region
      $region33: #{tpu_custom_call.1} parent=5 // pred_check
        _
      $region34: #{tpu_custom_call.1} parent=5 // pred_check_branch
        %293 = sbr.rel (%p290) target = $region36
      $region35: #{tpu_custom_call.1} parent=5 // pred_region
        %s294 = ssub.s32 %s24, 1
        %s295 = sand.u32 %s51, 1
        %s296 = scalar_lea.sflag [#allocation3], %s295
        %s297 = sand.u32 %s51, 1
        %s298 = smul.addr %s297, 8
        %s299 = scalar_lea.vmem [#allocation2], %s298
        // Predicated region
        $region37: #{tpu_custom_call.1} parent=35 // pred_check
          %p300 = pneg %p64
        $region38: #{tpu_custom_call.1} parent=35 // pred_check_branch
          %302 = sbr.rel (%p300) target = $region40
        $region39: #{tpu_custom_call.1} parent=35 // pred_region
          %303 = dma.done %s296, 128
        $region40: #{tpu_custom_call.1} parent=35 // pred_fallthru
          _
        // Predicated region
        $region41: #{tpu_custom_call.1} parent=35 // pred_check
          %p304 = pneg %p85
        $region42: #{tpu_custom_call.1} parent=35 // pred_check_branch
          %306 = sbr.rel (%p304) target = $region44
        $region43: #{tpu_custom_call.1} parent=35 // pred_region
          %307 = dma.done [#allocation6], 512
        $region44: #{tpu_custom_call.1} parent=35 // pred_fallthru
          _
        // Predicated region
        $region45: #{tpu_custom_call.1} parent=35 // pred_check
          %p308 = pneg %p106
        $region46: #{tpu_custom_call.1} parent=35 // pred_check_branch
          %310 = sbr.rel (%p308) target = $region48
        $region47: #{tpu_custom_call.1} parent=35 // pred_region
          %311 = dma.done [#allocation6], 512
        $region48: #{tpu_custom_call.1} parent=35 // pred_fallthru
          _
        // Predicated region
        $region49: #{tpu_custom_call.1} parent=35 // pred_check
          %p312 = pneg %p127
        $region50: #{tpu_custom_call.1} parent=35 // pred_check_branch
          %314 = sbr.rel (%p312) target = $region52
        $region51: #{tpu_custom_call.1} parent=35 // pred_region
          %315 = dma.done [#allocation9], 512
        $region52: #{tpu_custom_call.1} parent=35 // pred_fallthru
          _
        %s316 = sand.u32 %s51, 1
        %s317 = scalar_lea.sflag [#allocation3], %s316
        %s318 = sand.u32 %s51, 1
        %s319 = smul.addr %s318, 8
        %s320 = scalar_lea.vmem [#allocation2], %s319
        %p321 = pneg %p64
        %p322 = pneg %p61
        %p323 = pneg %p85
        %p324 = pneg %p82
        %p325 = pneg %p106
        %p326 = pneg %p103
        %p327 = pneg %p127
        %p328 = pneg %p124
        %p329 = pneg %p155
        %p330 = pneg %p152
        %s331 = sand.u32 %s142, 1
        %s332 = scalar_lea.sflag [#allocation4], %s331
        %s333 = sand.u32 %s142, 1
        %s334 = smul.addr %s333, 32
        %s335 = scalar_lea.vmem [#allocation10], %s334
        %p336 = pneg %p183
        %p337 = pneg %p180
        %s338 = sand.u32 %s29, 1
        %s339 = scalar_lea.sflag [#allocation12], %s338
        %s340 = sand.u32 %s170, 1
        %s341 = smul.addr %s340, 32
        %s342 = scalar_lea.vmem [#allocation11], %s341
        %p343 = pneg %p211
        %p344 = pneg %p208
        %s345 = sand.u32 %s29, 1
        %s346 = scalar_lea.sflag [#allocation12], %s345
        %s347 = sand.u32 %s198, 1
        %s348 = smul.addr %s347, 32
        %s349 = scalar_lea.vmem [#allocation13], %s348
        %v350 = vld [vmem:[%s299] sm:$0xff]
        %v351 = vld [vmem:[#allocation5] sm:$0xff]
        %v352 = vld [vmem:[#allocation5 + $0x8] sm:$0xff]
        %v353 = vld [vmem:[#allocation5 + $0x10] sm:$0xff]
        %v354 = vld [vmem:[#allocation5 + $0x18] sm:$0xff]
        %vm355 = vcmask 261120
        %v357 = vsel %vm355, %v350, 0
        %359 = vmatprep.subr.mxu0 0.0
        %360 = vmatpush1.msra.mxu0 0.0
        %361 = vmatprep.subr.mxu0 0.0
        %362 = vmatpush1.msra.mxu0 0.0
        %363 = vmatprep.subr.mxu0 0.0
        %364 = vmatpush1.msra.mxu0 0.0
        %365 = vmatprep.subr.mxu0 0.0
        %366 = vmatpush1.msra.mxu0 0.0
        %367 = vmatprep.subr.mxu0 0.0
        %368 = vmatpush1.msra.mxu0 0.0
        %369 = vmatprep.subr.mxu0 0.0
        %370 = vmatpush1.msra.mxu0 0.0
        %371 = vmatprep.subr.mxu0 0.0
        %372 = vmatpush1.msra.mxu0 0.0
        %373 = vmatprep.subr.mxu0 0.0
        %374 = vmatpush1.msra.mxu0 0.0
        %375 = vmatprep.subr.mxu0 0.0
        %376 = vmatpush1.msra.mxu0 0.0
        %377 = vmatprep.subr.mxu0 0.0
        %378 = vmatpush1.msra.mxu0 0.0
        %379 = vmatprep.subr.mxu0 0.0
        %380 = vmatpush1.msra.mxu0 0.0
        %381 = vmatprep.subr.mxu0 0.0
        %382 = vmatpush1.msra.mxu0 0.0
        %383 = vmatprep.subr.mxu0 0.0
        %384 = vmatpush1.msra.mxu0 %v354
        %385 = vmatprep.subr.mxu0 0.0
        %386 = vmatpush1.msra.mxu0 %v353
        %387 = vmatprep.subr.mxu0 0.0
        %388 = vmatpush1.msra.mxu0 %v352
        %389 = vmatprep.subr.mxu0 0.0
        %390 = vmatpush1.msra.mxu0 %v351
        %391 = vmatprep.subr.mxu0 0.0
        %392 = vmatpush2.msra.mxu0 0.0
        %393 = vmatprep.subr.mxu0 0.0
        %394 = vmatpush2.msra.mxu0 0.0
        %395 = vmatprep.subr.mxu0 0.0
        %396 = vmatpush2.msra.mxu0 0.0
        %397 = vmatprep.subr.mxu0 0.0
        %398 = vmatpush2.msra.mxu0 0.0
        %399 = vmatprep.subr.mxu0 0.0
        %400 = vmatpush2.msra.mxu0 0.0
        %401 = vmatprep.subr.mxu0 0.0
        %402 = vmatpush2.msra.mxu0 0.0
        %403 = vmatprep.subr.mxu0 0.0
        %404 = vmatpush2.msra.mxu0 0.0
        %405 = vmatprep.subr.mxu0 0.0
        %406 = vmatpush2.msra.mxu0 0.0
        %407 = vmatprep.subr.mxu0 0.0
        %408 = vmatpush2.msra.mxu0 0.0
        %409 = vmatprep.subr.mxu0 0.0
        %410 = vmatpush2.msra.mxu0 0.0
        %411 = vmatprep.subr.mxu0 0.0
        %412 = vmatpush2.msra.mxu0 0.0
        %413 = vmatprep.subr.mxu0 0.0
        %414 = vmatpush2.msra.mxu0 0.0
        %415 = vmatprep.subr.mxu0 0.0
        %416 = vmatpush2.msra.mxu0 0.0
        %417 = vmatprep.subr.mxu0 0.0
        %418 = vmatpush2.msra.mxu0 0.0
        %419 = vmatprep.subr.mxu0 0.0
        %420 = vmatpush2.msra.mxu0 0.0
        %421 = vmatprep.subr.mxu0 0.0
        %422 = vmatpush2.msra.mxu0 0.0
        %423 = vmatprep.mubr.f32.mxu0 0.0
        %424 = vmatmul.mubr.f32.gmra.mxu0 %v357
        %v425 = vpop.f32.mrf.mxu0
        %v426 = vadd.f32 0.0, %v425
        %v427 = vpop.f32.mrf.mxu0
        %428 = vdwg.mxu0
        %v429 = vld [vmem:[#allocation7] sm:$0xff]
        %v430 = vld [vmem:[#allocation7 + $0x8] sm:$0xff]
        %v431 = vld [vmem:[#allocation7 + $0x10] sm:$0xff]
        %v432 = vld [vmem:[#allocation7 + $0x18] sm:$0xff]
        %433 = vmatprep.subr.mxu0 0.0
        %434 = vmatpush1.msra.mxu0 0.0
        %435 = vmatprep.subr.mxu0 0.0
        %436 = vmatpush1.msra.mxu0 0.0
        %437 = vmatprep.subr.mxu0 0.0
        %438 = vmatpush1.msra.mxu0 0.0
        %439 = vmatprep.subr.mxu0 0.0
        %440 = vmatpush1.msra.mxu0 0.0
        %441 = vmatprep.subr.mxu0 0.0
        %442 = vmatpush1.msra.mxu0 0.0
        %443 = vmatprep.subr.mxu0 0.0
        %444 = vmatpush1.msra.mxu0 0.0
        %445 = vmatprep.subr.mxu0 0.0
        %446 = vmatpush1.msra.mxu0 0.0
        %447 = vmatprep.subr.mxu0 0.0
        %448 = vmatpush1.msra.mxu0 0.0
        %449 = vmatprep.subr.mxu0 0.0
        %450 = vmatpush1.msra.mxu0 0.0
        %451 = vmatprep.subr.mxu0 0.0
        %452 = vmatpush1.msra.mxu0 0.0
        %453 = vmatprep.subr.mxu0 0.0
        %454 = vmatpush1.msra.mxu0 0.0
        %455 = vmatprep.subr.mxu0 0.0
        %456 = vmatpush1.msra.mxu0 0.0
        %457 = vmatprep.subr.mxu0 0.0
        %458 = vmatpush1.msra.mxu0 %v432
        %459 = vmatprep.subr.mxu0 0.0
        %460 = vmatpush1.msra.mxu0 %v431
        %461 = vmatprep.subr.mxu0 0.0
        %462 = vmatpush1.msra.mxu0 %v430
        %463 = vmatprep.subr.mxu0 0.0
        %464 = vmatpush1.msra.mxu0 %v429
        %465 = vmatprep.subr.mxu0 0.0
        %466 = vmatpush2.msra.mxu0 0.0
        %467 = vmatprep.subr.mxu0 0.0
        %468 = vmatpush2.msra.mxu0 0.0
        %469 = vmatprep.subr.mxu0 0.0
        %470 = vmatpush2.msra.mxu0 0.0
        %471 = vmatprep.subr.mxu0 0.0
        %472 = vmatpush2.msra.mxu0 0.0
        %473 = vmatprep.subr.mxu0 0.0
        %474 = vmatpush2.msra.mxu0 0.0
        %475 = vmatprep.subr.mxu0 0.0
        %476 = vmatpush2.msra.mxu0 0.0
        %477 = vmatprep.subr.mxu0 0.0
        %478 = vmatpush2.msra.mxu0 0.0
        %479 = vmatprep.subr.mxu0 0.0
        %480 = vmatpush2.msra.mxu0 0.0
        %481 = vmatprep.subr.mxu0 0.0
        %482 = vmatpush2.msra.mxu0 0.0
        %483 = vmatprep.subr.mxu0 0.0
        %484 = vmatpush2.msra.mxu0 0.0
        %485 = vmatprep.subr.mxu0 0.0
        %486 = vmatpush2.msra.mxu0 0.0
        %487 = vmatprep.subr.mxu0 0.0
        %488 = vmatpush2.msra.mxu0 0.0
        %489 = vmatprep.subr.mxu0 0.0
        %490 = vmatpush2.msra.mxu0 0.0
        %491 = vmatprep.subr.mxu0 0.0
        %492 = vmatpush2.msra.mxu0 0.0
        %493 = vmatprep.subr.mxu0 0.0
        %494 = vmatpush2.msra.mxu0 0.0
        %495 = vmatprep.subr.mxu0 0.0
        %496 = vmatpush2.msra.mxu0 0.0
        %497 = vmatprep.mubr.f32.mxu0 0.0
        %498 = vmatmul.mubr.f32.gmra.mxu0 %v357
        %v499 = vpop.f32.mrf.mxu0
        %v500 = vadd.f32 0.0, %v499
        %v501 = vpop.f32.mrf.mxu0
        %502 = vdwg.mxu0
        %v503 = vld [vmem:[#allocation8] sm:$0xff]
        %v504 = vld [vmem:[#allocation8 + $0x8] sm:$0xff]
        %v505 = vld [vmem:[#allocation8 + $0x10] sm:$0xff]
        %v506 = vld [vmem:[#allocation8 + $0x18] sm:$0xff]
        %507 = vmatprep.subr.mxu0 0.0
        %508 = vmatpush1.msra.mxu0 0.0
        %509 = vmatprep.subr.mxu0 0.0
        %510 = vmatpush1.msra.mxu0 0.0
        %511 = vmatprep.subr.mxu0 0.0
        %512 = vmatpush1.msra.mxu0 0.0
        %513 = vmatprep.subr.mxu0 0.0
        %514 = vmatpush1.msra.mxu0 0.0
        %515 = vmatprep.subr.mxu0 0.0
        %516 = vmatpush1.msra.mxu0 0.0
        %517 = vmatprep.subr.mxu0 0.0
        %518 = vmatpush1.msra.mxu0 0.0
        %519 = vmatprep.subr.mxu0 0.0
        %520 = vmatpush1.msra.mxu0 0.0
        %521 = vmatprep.subr.mxu0 0.0
        %522 = vmatpush1.msra.mxu0 0.0
        %523 = vmatprep.subr.mxu0 0.0
        %524 = vmatpush1.msra.mxu0 0.0
        %525 = vmatprep.subr.mxu0 0.0
        %526 = vmatpush1.msra.mxu0 0.0
        %527 = vmatprep.subr.mxu0 0.0
        %528 = vmatpush1.msra.mxu0 0.0
        %529 = vmatprep.subr.mxu0 0.0
        %530 = vmatpush1.msra.mxu0 0.0
        %531 = vmatprep.subr.mxu0 0.0
        %532 = vmatpush1.msra.mxu0 %v506
        %533 = vmatprep.subr.mxu0 0.0
        %534 = vmatpush1.msra.mxu0 %v505
        %535 = vmatprep.subr.mxu0 0.0
        %536 = vmatpush1.msra.mxu0 %v504
        %537 = vmatprep.subr.mxu0 0.0
        %538 = vmatpush1.msra.mxu0 %v503
        %539 = vmatprep.subr.mxu0 0.0
        %540 = vmatpush2.msra.mxu0 0.0
        %541 = vmatprep.subr.mxu0 0.0
        %542 = vmatpush2.msra.mxu0 0.0
        %543 = vmatprep.subr.mxu0 0.0
        %544 = vmatpush2.msra.mxu0 0.0
        %545 = vmatprep.subr.mxu0 0.0
        %546 = vmatpush2.msra.mxu0 0.0
        %547 = vmatprep.subr.mxu0 0.0
        %548 = vmatpush2.msra.mxu0 0.0
        %549 = vmatprep.subr.mxu0 0.0
        %550 = vmatpush2.msra.mxu0 0.0
        %551 = vmatprep.subr.mxu0 0.0
        %552 = vmatpush2.msra.mxu0 0.0
        %553 = vmatprep.subr.mxu0 0.0
        %554 = vmatpush2.msra.mxu0 0.0
        %555 = vmatprep.subr.mxu0 0.0
        %556 = vmatpush2.msra.mxu0 0.0
        %557 = vmatprep.subr.mxu0 0.0
        %558 = vmatpush2.msra.mxu0 0.0
        %559 = vmatprep.subr.mxu0 0.0
        %560 = vmatpush2.msra.mxu0 0.0
        %561 = vmatprep.subr.mxu0 0.0
        %562 = vmatpush2.msra.mxu0 0.0
        %563 = vmatprep.subr.mxu0 0.0
        %564 = vmatpush2.msra.mxu0 0.0
        %565 = vmatprep.subr.mxu0 0.0
        %566 = vmatpush2.msra.mxu0 0.0
        %567 = vmatprep.subr.mxu0 0.0
        %568 = vmatpush2.msra.mxu0 0.0
        %569 = vmatprep.subr.mxu0 0.0
        %570 = vmatpush2.msra.mxu0 0.0
        %571 = vmatprep.mubr.f32.mxu0 0.0
        %572 = vmatmul.mubr.f32.gmra.mxu0 %v357
        %v573 = vpop.f32.mrf.mxu0
        %v574 = vadd.f32 0.0, %v573
        %v575 = vpop.f32.mrf.mxu0
        %576 = vdwg.mxu0
        %vm577 = vcmask 64512
        %578 = vst.msk [vmem:[%s335] sm:$0xff] %vm577, %v426
        %579 = vst.msk [vmem:[%s342] sm:$0xff] %vm577, %v500
        %580 = vst.msk [vmem:[%s349] sm:$0xff] %vm577, %v574
        %582 = vrot.lane.b32.xlu0 %v426, 120
        %v583 = vpop.permute.xlu0 %582
        %s585 = scalar_lea.vmem %s335, 8 [#allocation10]
        %586 = vst.msk [vmem:[%s585] sm:$0xff] %vm577, %v583
        %588 = vrot.lane.b32.xlu0 %v500, 120
        %v589 = vpop.permute.xlu0 %588
        %s591 = scalar_lea.vmem %s342, 8 [#allocation11]
        %592 = vst.msk [vmem:[%s591] sm:$0xff] %vm577, %v589
        %594 = vrot.lane.b32.xlu0 %v574, 120
        %v595 = vpop.permute.xlu0 %594
        %s597 = scalar_lea.vmem %s349, 8 [#allocation13]
        %598 = vst.msk [vmem:[%s597] sm:$0xff] %vm577, %v595
        %599 = vrot.lane.b32.xlu0 %v426, 112
        %v600 = vpop.permute.xlu0 %599
        %s602 = scalar_lea.vmem %s335, 16 [#allocation10]
        %603 = vst.msk [vmem:[%s602] sm:$0xff] %vm577, %v600
        %604 = vrot.lane.b32.xlu0 %v500, 112
        %v605 = vpop.permute.xlu0 %604
        %s607 = scalar_lea.vmem %s342, 16 [#allocation11]
        %608 = vst.msk [vmem:[%s607] sm:$0xff] %vm577, %v605
        %609 = vrot.lane.b32.xlu0 %v574, 112
        %v610 = vpop.permute.xlu0 %609
        %s612 = scalar_lea.vmem %s349, 16 [#allocation13]
        %613 = vst.msk [vmem:[%s612] sm:$0xff] %vm577, %v610
        %614 = vrot.lane.b32.xlu0 %v426, 104
        %v615 = vpop.permute.xlu0 %614
        %s617 = scalar_lea.vmem %s335, 24 [#allocation10]
        %618 = vst.msk [vmem:[%s617] sm:$0xff] %vm577, %v615
        %619 = vrot.lane.b32.xlu0 %v500, 104
        %v620 = vpop.permute.xlu0 %619
        %s622 = scalar_lea.vmem %s342, 24 [#allocation11]
        %623 = vst.msk [vmem:[%s622] sm:$0xff] %vm577, %v620
        %624 = vrot.lane.b32.xlu0 %v574, 104
        %v625 = vpop.permute.xlu0 %624
        %s627 = scalar_lea.vmem %s349, 24 [#allocation13]
        %628 = vst.msk [vmem:[%s627] sm:$0xff] %vm577, %v625
        %s629 = sand.u32 %s142, 1
        %s630 = scalar_lea.sflag [#allocation4], %s629
        %s631 = sand.u32 %s142, 1
        %s632 = smul.addr %s631, 32
        %s633 = scalar_lea.vmem [#allocation10], %s632
        %s634 = sand.u32 %s29, 1
        %s635 = scalar_lea.sflag [#allocation12], %s634
        %s636 = sand.u32 %s170, 1
        %s637 = smul.addr %s636, 32
        %s638 = scalar_lea.vmem [#allocation11], %s637
        %s639 = sand.u32 %s29, 1
        %s640 = scalar_lea.sflag [#allocation12], %s639
        %s641 = sand.u32 %s198, 1
        %s642 = smul.addr %s641, 32
        %s643 = scalar_lea.vmem [#allocation13], %s642
        // Predicated region
        $region53: #{tpu_custom_call.1} parent=35 // pred_check
          %p644 = pneg %p152
        $region54: #{tpu_custom_call.1} parent=35 // pred_check_branch
          %646 = sbr.rel (%p644) target = $region56
        $region55: #{tpu_custom_call.1} parent=35 // pred_region
          %s648 = ssub.s32 512, 512
          %649 = vsyncadd %s630, %s648
          %s650 = smul.addr %s33, 4
          %s651 = sadd.s32 %s34, %s650
          %s652 = smul.addr %s651, 128
          %s653 = scalar_lea.hbm %s4, %s652
          %s654 = sshll.u32 %s633, 4
          %s655 = int_to_ptr.vmem [resolvable:$true] %s654
          %660 = dma.vmem_to_hbm [thread:$0]  %s655, 512, %s653, %s630, 128, 128, 8
        $region56: #{tpu_custom_call.1} parent=35 // pred_fallthru
          _
        // Predicated region
        $region57: #{tpu_custom_call.1} parent=35 // pred_check
          %p661 = pneg %p180
        $region58: #{tpu_custom_call.1} parent=35 // pred_check_branch
          %663 = sbr.rel (%p661) target = $region60
        $region59: #{tpu_custom_call.1} parent=35 // pred_region
          %s665 = ssub.s32 512, 512
          %666 = vsyncadd %s635, %s665
          %s667 = smul.addr %s33, 4
          %s668 = sadd.s32 %s34, %s667
          %s669 = smul.addr %s668, 128
          %s670 = scalar_lea.hbm %s5, %s669
          %s671 = sshll.u32 %s638, 4
          %s672 = int_to_ptr.vmem [resolvable:$true] %s671
          %677 = dma.vmem_to_hbm [thread:$0]  %s672, 512, %s670, %s635, 128, 128, 8
        $region60: #{tpu_custom_call.1} parent=35 // pred_fallthru
          _
        // Predicated region
        $region61: #{tpu_custom_call.1} parent=35 // pred_check
          %p678 = pneg %p208
        $region62: #{tpu_custom_call.1} parent=35 // pred_check_branch
          %680 = sbr.rel (%p678) target = $region64
        $region63: #{tpu_custom_call.1} parent=35 // pred_region
          %s682 = ssub.s32 512, 512
          %683 = vsyncadd %s640, %s682
          %s684 = smul.addr %s33, 4
          %s685 = sadd.s32 %s34, %s684
          %s686 = smul.addr %s685, 128
          %s687 = scalar_lea.hbm %s6, %s686
          %s688 = sshll.u32 %s643, 4
          %s689 = int_to_ptr.vmem [resolvable:$true] %s688
          %694 = dma.vmem_to_hbm [thread:$0]  %s689, 512, %s687, %s640, 128, 128, 8
        $region64: #{tpu_custom_call.1} parent=35 // pred_fallthru
          _
      $region36: #{tpu_custom_call.1} parent=5 // pred_fallthru
        _
      %p695 = scmp.le.s32.totalorder 2, %s24
      // Predicated region
      $region65: #{tpu_custom_call.1} parent=5 // pred_check
        %p696 = pneg %p695
      $region66: #{tpu_custom_call.1} parent=5 // pred_check_branch
        %698 = sbr.rel (%p696) target = $region68
      $region67: #{tpu_custom_call.1} parent=5 // pred_region
        %s699 = ssub.s32 %s24, 2
        // Predicated region
        $region69: #{tpu_custom_call.1} parent=67 // pred_check
          %p700 = pneg %p158
        $region70: #{tpu_custom_call.1} parent=67 // pred_check_branch
          %702 = sbr.rel (%p700) target = $region72
        $region71: #{tpu_custom_call.1} parent=67 // pred_region
          %s703 = sand.u32 %s143, 1
          %s704 = scalar_lea.sflag [#allocation4], %s703
          %s705 = sand.u32 %s143, 1
          %s706 = smul.addr %s705, 32
          %s707 = scalar_lea.vmem [#allocation10], %s706
          %708 = dma.done %s704, 512
        $region72: #{tpu_custom_call.1} parent=67 // pred_fallthru
          _
        // Predicated region
        $region73: #{tpu_custom_call.1} parent=67 // pred_check
          %p709 = pneg %p186
        $region74: #{tpu_custom_call.1} parent=67 // pred_check_branch
          %711 = sbr.rel (%p709) target = $region76
        $region75: #{tpu_custom_call.1} parent=67 // pred_region
          %s712 = sand.u32 %s30, 1
          %s713 = scalar_lea.sflag [#allocation12], %s712
          %s714 = sand.u32 %s171, 1
          %s715 = smul.addr %s714, 32
          %s716 = scalar_lea.vmem [#allocation11], %s715
          %717 = dma.done %s713, 512
        $region76: #{tpu_custom_call.1} parent=67 // pred_fallthru
          _
        // Predicated region
        $region77: #{tpu_custom_call.1} parent=67 // pred_check
          %p718 = pneg %p214
        $region78: #{tpu_custom_call.1} parent=67 // pred_check_branch
          %720 = sbr.rel (%p718) target = $region80
        $region79: #{tpu_custom_call.1} parent=67 // pred_region
          %s721 = sand.u32 %s30, 1
          %s722 = scalar_lea.sflag [#allocation12], %s721
          %s723 = sand.u32 %s199, 1
          %s724 = smul.addr %s723, 32
          %s725 = scalar_lea.vmem [#allocation13], %s724
          %726 = dma.done %s722, 512
        $region80: #{tpu_custom_call.1} parent=67 // pred_fallthru
          _
      $region68: #{tpu_custom_call.1} parent=5 // pred_fallthru
        _
    $region6: #{tpu_custom_call.1} parent=1 // loop_footer
      %s28 = sadd.s32 1, %s24
    $region7: #{tpu_custom_call.1} parent=1 // loop_footer_branch
      %23 = sbr.rel target = $region3
    $region8: #{tpu_custom_call.1} parent=1 // loop_exit
      _
    %727 = vsyncpa [#allocation3], 1
    %s728 = scalar_lea.sflag [#allocation3], 1
    %729 = vsyncpa %s728, 1
    %730 = vsyncpa [#allocation6], 1
    %731 = vsyncpa [#allocation9], 1
    %732 = vsyncpa [#allocation4], 1
    %s733 = scalar_lea.sflag [#allocation4], 1
    %734 = vsyncpa %s733, 1
    %735 = vsyncpa [#allocation12], 1
    %s736 = scalar_lea.sflag [#allocation12], 1
    %737 = vsyncpa %s736, 1

</llo_original>
